<compile_context>
chip_gen: v6e
topology: v6e:2x2x1
jax: 0.10.0
libtpu: 0.0.40
codegen_flags: <defaults>
</compile_context>

<pallas_src>
import functools

import jax
import jax.numpy as jnp
from jax import lax
from jax.experimental import pallas as pl
from jax.experimental.pallas import tpu as pltpu

BN_EPS = 1e-5


# ---------------------------------------------------------------------------
# Fused Conv2d + folded-BatchNorm [+ residual add] [+ ReLU]   (NHWC, bf16/MXU)
# ---------------------------------------------------------------------------
def _row_tile(ho):
    """Largest output-row tile <= 8 that divides Ho exactly."""
    for d in range(min(8, ho), 0, -1):
        if ho % d == 0:
            return d
    return 1


def _pack_weight_stride2(w, padding):
    """Fold a stride-2 width into the channel dim of an HWIO weight.

    Returns (w_eff, off0): w_eff has shape (KH, KW_eff, 2*Cin, Cout); tap kwe
    acts on packed column (ow + off0 + kwe) whose channels are
    [orig col 2j | orig col 2j+1].  Missing taps are zero.
    """
    KH, KW, Cin, Cout = w.shape
    off0 = (-padding) // 2
    off_last = (KW - 1 - padding) // 2
    KW_eff = off_last - off0 + 1
    w_eff = jnp.zeros((KH, KW_eff, 2 * Cin, Cout), w.dtype)
    for kw in range(KW):
        q = kw - padding
        kwe = (q // 2) - off0
        par = q % 2
        w_eff = w_eff.at[:, kwe, par * Cin:(par + 1) * Cin, :].set(w[:, kw])
    return w_eff, off0


def _conv_compute(x_ref, w_ref, shift_ref, res_ref, o_ref, *, S, P, off0, relu):
    # x_ref:     (1, H, Wk, Ck)       bf16 input (width-packed if S == 2)
    # w_ref:     (KH, KW_eff, Ck, Cout) bf16, BN scale already folded in
    # shift_ref: (1, Cout) f32 folded BN shift
    # res_ref:   (1, TH, Wo, Cout) bf16 residual (added pre-ReLU) or None
    # o_ref:     (1, TH, Wo, Cout)
    TH, Wo, Cout = o_ref.shape[1], o_ref.shape[2], o_ref.shape[3]
    H, Wk, Ck = x_ref.shape[1], x_ref.shape[2], x_ref.shape[3]
    KH, KW_eff = w_ref.shape[0], w_ref.shape[1]
    t = pl.program_id(1)
    row0 = t * (TH * S)

    pad_l = -off0
    pad_r = max(0, off0 + KW_eff - 1 + Wo - Wk)
    n_rows = (TH - 1) * S + KH

    # Load (once) every input row this output-row tile touches; mask rows that
    # fall outside the image and zero-fill the width halo (no HBM pad pass).
    rows = []
    for j in range(n_rows):
        r = row0 + (j - P)
        rv = x_ref[0, jnp.clip(r, 0, H - 1)]                       # (Wk, Ck)
        valid = jnp.logical_and(r >= 0, r < H)
        rv = jnp.where(valid, rv, jnp.zeros_like(rv))
        parts = []
        if pad_l > 0:
            parts.append(jnp.zeros((pad_l, Ck), rv.dtype))
        parts.append(rv)
        if pad_r > 0:
            parts.append(jnp.zeros((pad_r, Ck), rv.dtype))
        rows.append(parts[0] if len(parts) == 1 else
                    jnp.concatenate(parts, axis=0))                # (Wpad, Ck)

    # One MXU dot per (kh, kw) tap over the whole row tile: LHS (TH*Wo, Ck).
    acc = jnp.zeros((TH * Wo, Cout), jnp.float32)
    for kh in range(KH):
        for kwe in range(KW_eff):
            if TH == 1:
                lhs = rows[kh][kwe:kwe + Wo, :]
            else:
                lhs = jnp.concatenate(
                    [rows[i * S + kh][kwe:kwe + Wo, :] for i in range(TH)],
                    axis=0)
            acc = acc + jnp.dot(lhs, w_ref[kh, kwe],
                                preferred_element_type=jnp.float32)

    acc = acc + shift_ref[...]               # folded-BN shift, one broadcast

    for i in range(TH):
        row = acc[i * Wo:(i + 1) * Wo, :]
        if res_ref is not None:
            row = row + res_ref[0, i].astype(jnp.float32)
        if relu:
            row = jnp.maximum(row, 0.0)
        o_ref[0, i] = row.astype(o_ref.dtype)


def _conv_kernel(x_ref, w_ref, shift_ref, o_ref, **kw):
    _conv_compute(x_ref, w_ref, shift_ref, None, o_ref, **kw)


def _conv_res_kernel(x_ref, w_ref, shift_ref, res_ref, o_ref, **kw):
    _conv_compute(x_ref, w_ref, shift_ref, res_ref, o_ref, **kw)


def conv_bn_act_pallas(x, w, bn, *, stride, padding, relu, residual=None,
                       out_dtype=jnp.bfloat16):
    """y = [relu]( conv2d(x, w, stride, padding) * bn_scale + bn_shift [+ residual] ).

    x: (N, H, W, Cin) NHWC; w: (KH, KW, Cin, Cout) HWIO; BN in inference mode.
    """
    N, H, W, Cin = x.shape
    KH, KW, _, Cout = w.shape

    scale = bn["gamma"] * lax.rsqrt(bn["var"] + BN_EPS)
    shift = (bn["beta"] - bn["mean"] * scale).reshape(1, Cout).astype(jnp.float32)
    w = (w * scale.reshape(1, 1, 1, Cout)).astype(jnp.float32)     # fold BN scale

    if stride > 1 and KH == 1 and KW == 1 and padding == 0:
        # 1x1 strided conv == 1x1 stride-1 conv on the subsampled input (exact).
        x = x[:, ::stride, ::stride, :]
        N, H, W, Cin = x.shape
        stride = 1

    assert stride in (1, 2)
    Ho = (H + 2 * padding - KH) // stride + 1
    Wo = (W + 2 * padding - KW) // stride + 1

    if stride == 1:
        xk, w_eff, off0, Cin_eff = x, w, -padding, Cin
    else:
        assert W % 2 == 0, "stride-2 conv needs an even input width"
        w_eff, off0 = _pack_weight_stride2(w, padding)
        Cin_eff = 2 * Cin
        xk = x.reshape(N, H, W // 2, Cin_eff)      # free view: width pairs -> lanes

    KW_eff = w_eff.shape[1]
    xk = xk.astype(jnp.bfloat16)
    wk = w_eff.astype(jnp.bfloat16)

    TH = _row_tile(Ho)
    grid = (N, Ho // TH)
    Hk, Wkp = xk.shape[1], xk.shape[2]

    inputs = [xk, wk, shift]
    in_specs = [
        pl.BlockSpec((1, Hk, Wkp, Cin_eff), lambda n, t: (n, 0, 0, 0)),
        pl.BlockSpec((KH, KW_eff, Cin_eff, Cout), lambda n, t: (0, 0, 0, 0)),
        pl.BlockSpec((1, Cout), lambda n, t: (0, 0)),
    ]
    kwargs = dict(S=stride, P=padding, off0=off0, relu=relu)
    if residual is not None:
        assert residual.shape == (N, Ho, Wo, Cout)
        inputs.append(residual.astype(jnp.bfloat16))
        in_specs.append(pl.BlockSpec((1, TH, Wo, Cout), lambda n, t: (n, t, 0, 0)))
        kernel = functools.partial(_conv_res_kernel, **kwargs)
    else:
        kernel = functools.partial(_conv_kernel, **kwargs)

    flops = 2 * N * Ho * Wo * KH * KW * Cin * Cout
    bytes_accessed = (xk.size + wk.size + N * Ho * Wo * Cout) * 2 + shift.size * 4
    if residual is not None:
        bytes_accessed += residual.size * 2

    return pl.pallas_call(
        kernel,
        out_shape=jax.ShapeDtypeStruct((N, Ho, Wo, Cout), out_dtype),
        grid=grid,
        in_specs=in_specs,
        out_specs=pl.BlockSpec((1, TH, Wo, Cout), lambda n, t: (n, t, 0, 0)),
        compiler_params=pltpu.CompilerParams(
            dimension_semantics=("parallel", "parallel")),
        cost_estimate=pl.CostEstimate(flops=flops, transcendentals=0,
                                      bytes_accessed=int(bytes_accessed)),
    )(*inputs)


# ---------------------------------------------------------------------------
# MaxPool2d (kernel_size=3, stride=2, padding=1 in ResNet), NHWC
# ---------------------------------------------------------------------------
def _shifted_window(arr, off, n):
    """arr[off : off + n] along axis 0, filling out-of-range rows with -inf."""
    W2, C = arr.shape
    lo, hi = max(off, 0), min(off + n, W2)
    if hi <= lo:
        return jnp.full((n, C), -jnp.inf, arr.dtype)
    parts = []
    if lo > off:
        parts.append(jnp.full((lo - off, C), -jnp.inf, arr.dtype))
    parts.append(arr[lo:hi])
    if off + n > hi:
        parts.append(jnp.full((off + n - hi, C), -jnp.inf, arr.dtype))
    return parts[0] if len(parts) == 1 else jnp.concatenate(parts, axis=0)


def _maxpool_kernel(x_ref, o_ref, *, K, S, P, C, H, TH):
    # x_ref: (1, H, W2, 2C) even/odd column pairs packed into lanes
    # o_ref: (1, TH, Wo, C) one tile of output rows
    Wo = o_ref.shape[2]
    W2 = x_ref.shape[2]
    t = pl.program_id(1)

    def row(i, carry):
        oh = t * TH + i
        rm = jnp.full((W2, 2 * C), -jnp.inf, jnp.float32)
        for kh in range(K):
            r = oh * S + kh - P
            rv = x_ref[0, jnp.clip(r, 0, H - 1)].astype(jnp.float32)
            valid = jnp.logical_and(r >= 0, r < H)
            rm = jnp.maximum(rm, jnp.where(valid, rv, -jnp.inf))
        even, odd = rm[:, :C], rm[:, C:]
        out = jnp.full((Wo, C), -jnp.inf, jnp.float32)
        for kw in range(K):
            d = kw - P
            src = even if d % 2 == 0 else odd
            out = jnp.maximum(out, _shifted_window(src, d // 2, Wo))
        o_ref[0, i] = out.astype(o_ref.dtype)
        return carry

    lax.fori_loop(0, TH, row, 0)


def max_pool2d_pallas(x, kernel_size, stride=None, padding=1):
    """F.max_pool2d on an NHWC tensor (stride must be 2, W even)."""
    if stride is None:
        stride = kernel_size
    K, S, P = kernel_size, stride, padding
    N, H, W, C = x.shape
    Ho = (H + 2 * P - K) // S + 1
    Wo = (W + 2 * P - K) // S + 1
    assert S == 2 and W % 2 == 0
    W2 = W // 2
    xr = x.reshape(N, H, W2, 2 * C)               # free view: (even|odd) -> lanes
    TH = min(8, Ho)
    grid = (N, pl.cdiv(Ho, TH))
    return pl.pallas_call(
        functools.partial(_maxpool_kernel, K=K, S=S, P=P, C=C, H=H, TH=TH),
        out_shape=jax.ShapeDtypeStruct((N, Ho, Wo, C), x.dtype),
        grid=grid,
        in_specs=[pl.BlockSpec((1, H, W2, 2 * C), lambda n, t: (n, 0, 0, 0))],
        out_specs=pl.BlockSpec((1, TH, Wo, C), lambda n, t: (n, t, 0, 0)),
        compiler_params=pltpu.CompilerParams(
            dimension_semantics=("parallel", "parallel")),
    )(xr)


# ---------------------------------------------------------------------------
# AveragePool (global HW mean) + Flatten + Linear fused:  NHWC -> (N, classes)
# ---------------------------------------------------------------------------
def _avgpool_fc_kernel(x_ref, w_ref, b_ref, o_ref):
    H, W = x_ref.shape[1], x_ref.shape[2]
    xv = x_ref[0].astype(jnp.float32)                              # (H, W, C)
    pooled = jnp.sum(jnp.sum(xv, axis=0), axis=0, keepdims=True) * (1.0 / (H * W))
    o_ref[...] = (jnp.dot(pooled, w_ref[...],
                          preferred_element_type=jnp.float32)
                  + b_ref[...]).astype(o_ref.dtype)


def avgpool_fc_pallas(x, fc_w, fc_b):
    # fc_w: (out_features, in_features), fc_b: (out_features,) -- PyTorch layout.
    N, H, W, C = x.shape
    O = fc_w.shape[0]
    wt = fc_w.T.astype(jnp.float32)                                # (C, O)
    b = fc_b.reshape(1, O).astype(jnp.float32)
    return pl.pallas_call(
        _avgpool_fc_kernel,
        out_shape=jax.ShapeDtypeStruct((N, O), jnp.float32),
        grid=(N,),
        in_specs=[pl.BlockSpec((1, H, W, C), lambda n: (n, 0, 0, 0)),
                  pl.BlockSpec((C, O), lambda n: (0, 0)),
                  pl.BlockSpec((1, O), lambda n: (0, 0))],
        out_specs=pl.BlockSpec((1, O), lambda n: (n, 0)),
        compiler_params=pltpu.CompilerParams(dimension_semantics=("parallel",)),
    )(x, wt, b)


# ---------------------------------------------------------------------------
# XLA reference conv+BN(+res)(+ReLU) with the same bf16 numerics as the kernel
# ---------------------------------------------------------------------------
def _ref_conv_bn(x, w, bn, stride, padding, relu, residual=None):
    scale = bn["gamma"] * lax.rsqrt(bn["var"] + BN_EPS)
    shift = bn["beta"] - bn["mean"] * scale
    wf = (w * scale.reshape(1, 1, 1, -1)).astype(jnp.bfloat16)
    y = lax.conv_general_dilated(
        x.astype(jnp.bfloat16), wf, (stride, stride),
        ((padding, padding), (padding, padding)),
        dimension_numbers=("NHWC", "HWIO", "NHWC"),
        preferred_element_type=jnp.float32)
    y = y + shift
    if residual is not None:
        y = y + residual.astype(jnp.float32)
    if relu:
        y = jnp.maximum(y, 0.0)
    return y.astype(jnp.bfloat16)


# ---------------------------------------------------------------------------
# ResNet34 (inference): parameters + Pallas forward + XLA reference
# ---------------------------------------------------------------------------
def _make_bn(c):
    return {"gamma": jnp.ones((c,), jnp.float32),
            "beta": jnp.zeros((c,), jnp.float32),
            "mean": jnp.zeros((c,), jnp.float32),
            "var": jnp.ones((c,), jnp.float32)}


def _make_conv(key, kh, kw, cin, cout):
    # He-uniform stand-in for the original init scale (forward graph unchanged).
    bound = (6.0 / (kh * kw * cin)) ** 0.5
    return jax.random.uniform(key, (kh, kw, cin, cout), jnp.float32, -bound, bound)


class ResNet34:
    def __init__(self, n_blocks_per_group=(3, 4, 6, 3),
                 out_features_per_group=(64, 128, 256, 512),
                 first_strides_per_group=(1, 2, 2, 2),
                 n_classes=1000, *, key):
        keys = iter(jax.random.split(key, 64))
        params = {"stem": {"w": _make_conv(next(keys), 7, 7, 3, 64),
                           "bn": _make_bn(64)}}
        groups, strides_cfg = [], []
        in_c = 64
        for gi in range(4):
            out_c = out_features_per_group[gi]
            blocks, strides = [], []
            for bi in range(n_blocks_per_group[gi]):
                stride = first_strides_per_group[gi] if bi == 0 else 1
                cin = in_c if bi == 0 else out_c
                blk = {"conv1": {"w": _make_conv(next(keys), 3, 3, cin, out_c),
                                 "bn": _make_bn(out_c)},
                       "conv2": {"w": _make_conv(next(keys), 3, 3, out_c, out_c),
                                 "bn": _make_bn(out_c)}}
                if stride > 1:
                    blk["downsample"] = {"w": _make_conv(next(keys), 1, 1, cin, out_c),
                                         "bn": _make_bn(out_c)}
                blocks.append(blk)
                strides.append(stride)
            groups.append(blocks)
            strides_cfg.append(strides)
            in_c = out_c
        params["groups"] = groups
        fc_bound = (1.0 / out_features_per_group[-1]) ** 0.5
        params["fc"] = {
            "w": jax.random.uniform(next(keys), (n_classes, out_features_per_group[-1]),
                                    jnp.float32, -fc_bound, fc_bound),
            "b": jax.random.uniform(next(keys), (n_classes,),
                                    jnp.float32, -fc_bound, fc_bound),
        }
        self.params = params
        self.block_strides = strides_cfg
        self._fwd = jax.jit(self._forward)
        self._ref = jax.jit(self._reference)

    # ---- Pallas forward (inference: BN uses running stats) -----------------
    def _forward(self, params, x_nchw):
        x = jnp.transpose(x_nchw, (0, 2, 3, 1)).astype(jnp.bfloat16)  # NCHW->NHWC once
        st = params["stem"]
        x = conv_bn_act_pallas(x, st["w"], st["bn"], stride=2, padding=3, relu=True)
        x = max_pool2d_pallas(x, kernel_size=3, stride=2, padding=1)
        for gi, group in enumerate(params["groups"]):
            for bi, blk in enumerate(group):
                stride = self.block_strides[gi][bi]
                if "downsample" in blk:
                    ds = blk["downsample"]
                    right = conv_bn_act_pallas(x, ds["w"], ds["bn"],
                                               stride=stride, padding=0, relu=False)
                else:
                    right = x
                h = conv_bn_act_pallas(x, blk["conv1"]["w"], blk["conv1"]["bn"],
                                       stride=stride, padding=1, relu=True)
                # TODO(synk): fuse conv1+conv2 of the block into one pallas_call
                # keeping h in VMEM (removes one activation HBM round trip).
                x = conv_bn_act_pallas(h, blk["conv2"]["w"], blk["conv2"]["bn"],
                                       stride=1, padding=1, relu=True, residual=right)
        # AveragePool + Flatten + Linear, fused.
        return avgpool_fc_pallas(x, params["fc"]["w"], params["fc"]["b"])

    def __call__(self, x_nchw):
        return self._fwd(self.params, x_nchw)

    # ---- XLA reference with matching bf16 numerics --------------------------
    def _reference(self, params, x_nchw):
        x = jnp.transpose(x_nchw, (0, 2, 3, 1)).astype(jnp.bfloat16)
        st = params["stem"]
        x = _ref_conv_bn(x, st["w"], st["bn"], 2, 3, True)
        x = lax.reduce_window(x.astype(jnp.float32), -jnp.inf, lax.max,
                              (1, 3, 3, 1), (1, 2, 2, 1),
                              ((0, 0), (1, 1), (1, 1), (0, 0))).astype(jnp.bfloat16)
        for gi, group in enumerate(params["groups"]):
            for bi, blk in enumerate(group):
                stride = self.block_strides[gi][bi]
                if "downsample" in blk:
                    ds = blk["downsample"]
                    right = _ref_conv_bn(x, ds["w"], ds["bn"], stride, 0, False)
                else:
                    right = x
                h = _ref_conv_bn(x, blk["conv1"]["w"], blk["conv1"]["bn"],
                                 stride, 1, True)
                x = _ref_conv_bn(h, blk["conv2"]["w"], blk["conv2"]["bn"],
                                 1, 1, True, residual=right)
        pooled = jnp.mean(x.astype(jnp.float32), axis=(1, 2))
        return pooled @ params["fc"]["w"].T + params["fc"]["b"]

    def reference(self, x_nchw):
        return self._ref(self.params, x_nchw)


# ---------------------------------------------------------------------------
if __name__ == "__main__":
    root = jax.random.PRNGKey(0)
    k_model, k_x, k_mp, k_cx1, k_cw1, k_cx2, k_cw2, k_bn = jax.random.split(root, 8)

    def make_bn_random(key, c):
        k1, k2, k3, k4 = jax.random.split(key, 4)
        return {"gamma": jax.random.uniform(k1, (c,), jnp.float32, 0.5, 1.5),
                "beta": 0.1 * jax.random.normal(k2, (c,), jnp.float32),
                "mean": 0.1 * jax.random.normal(k3, (c,), jnp.float32),
                "var": jax.random.uniform(k4, (c,), jnp.float32, 0.5, 1.5)}

    def rel_err(a, b):
        a = jnp.asarray(a, jnp.float32)
        b = jnp.asarray(b, jnp.float32)
        return float(jnp.max(jnp.abs(a - b)) / (jnp.max(jnp.abs(b)) + 1e-8))

    # --- MaxPool kernel check (the ResNet stem pooling op) ---
    xm = jax.random.normal(k_mp, (2, 16, 16, 64), dtype=jnp.float32)
    mp = jax.block_until_ready(max_pool2d_pallas(xm, 3, 2, 1))
    mp_ref = lax.reduce_window(xm, -jnp.inf, lax.max, (1, 3, 3, 1), (1, 2, 2, 1),
                               ((0, 0), (1, 1), (1, 1), (0, 0)))
    assert mp.shape == (2, 8, 8, 64)
    assert bool(jnp.allclose(mp, mp_ref)), "max-pool Pallas kernel mismatch"

    # --- direct strided-conv kernel checks (7x7/s2 stem-like, 3x3/s2) ---
    for (kx, kw_key, hw, cin, cout, k, s, p) in [
        (k_cx1, k_cw1, 16, 8, 32, 7, 2, 3),
        (k_cx2, k_cw2, 12, 16, 32, 3, 2, 1),
    ]:
        xc = jax.random.normal(kx, (2, hw, hw, cin), jnp.float32).astype(jnp.bfloat16)
        wc = 0.1 * jax.random.normal(kw_key, (k, k, cin, cout), jnp.float32)
        bnc = make_bn_random(k_bn, cout)
        got = jax.block_until_ready(
            conv_bn_act_pallas(xc, wc, bnc, stride=s, padding=p, relu=True))
        want = _ref_conv_bn(xc, wc, bnc, s, p, True)
        assert got.shape == want.shape
        e = rel_err(got, want)
        assert e < 1e-2, f"conv {k}x{k}/s{s} mismatch: rel_err={e:.3e}"

    # --- full ResNet34 forward (inference), NCHW in, (N, 1000) logits out ---
    model = ResNet34(key=k_model)
    x = jax.random.normal(k_x, (2, 3, 32, 32), dtype=jnp.float32)
    out = jax.block_until_ready(model(x))
    assert out.shape == (2, 1000) and out.dtype == jnp.float32
    assert bool(jnp.all(jnp.isfinite(out)))

    ref = jax.block_until_ready(model.reference(x))
    e = rel_err(out, ref)
    assert e < 2e-2, f"ResNet34 Pallas forward mismatch: rel_err={e:.3e}"

    print("KERNEL_OK")
</pallas_src>

<mosaic_0001>
module attributes {stable_mosaic.version = 11 : i64} {
  func.func @_maxpool_kernel(%arg0: i32, %arg1: i32, %arg2: memref<1x16x8x128xf32, #tpu.memory_space<vmem>>, %arg3: memref<1x8x8x64xf32, #tpu.memory_space<vmem>>) attributes {dimension_semantics = [#tpu.dimension_semantics<parallel>, #tpu.dimension_semantics<parallel>], iteration_bounds = array<i64: 2, 1>, scalar_prefetch = 0 : i64, scratch_operands = 0 : i64, tpu.core_type = #tpu.core_type<tc>, window_params = [{transform_indices = @transform_0, window_bounds = array<i64: 1, 16, 8, 128>}, {transform_indices = @transform_1, window_bounds = array<i64: 1, 8, 8, 64>}]} {
    %c0_i32 = arith.constant 0 : i32
    %c8_i32 = arith.constant 8 : i32
    %0 = arith.addi %c0_i32, %c8_i32 : i32
    %c1_i32 = arith.constant 1 : i32
    scf.for %arg4 = %c0_i32 to %0 step %c1_i32  : i32 {
      %c8_i32_1 = arith.constant 8 : i32
      %1 = arith.muli %arg1, %c8_i32_1 : i32
      %2 = arith.addi %1, %arg4 : i32
      %cst = arith.constant 0xFF800000 : f32
      %3 = vector.broadcast %cst : f32 to vector<8x128xf32>
      %c2_i32 = arith.constant 2 : i32
      %4 = arith.muli %2, %c2_i32 : i32
      %c0_i32_2 = arith.constant 0 : i32
      %5 = arith.addi %4, %c0_i32_2 : i32
      %c1_i32_3 = arith.constant 1 : i32
      %6 = arith.subi %5, %c1_i32_3 : i32
      %c0_i32_4 = arith.constant 0 : i32
      %c15_i32 = arith.constant 15 : i32
      %7 = arith.maxsi %c0_i32_4, %6 : i32
      %8 = arith.minsi %c15_i32, %7 : i32
      %c0 = arith.constant 0 : index
      %9 = arith.index_cast %8 : i32 to index
      %c0_5 = arith.constant 0 : index
      %c0_6 = arith.constant 0 : index
      %10 = vector.load %arg2[%c0, %9, %c0_5, %c0_6] : memref<1x16x8x128xf32, #tpu.memory_space<vmem>>, vector<1x1x8x128xf32>
      %11 = vector.shape_cast %10 : vector<1x1x8x128xf32> to vector<8x128xf32>
      %c0_i32_7 = arith.constant 0 : i32
      %12 = arith.cmpi sge, %6, %c0_i32_7 : i32
      %c16_i32 = arith.constant 16 : i32
      %13 = arith.cmpi slt, %6, %c16_i32 : i32
      %14 = arith.andi %12, %13 : i1
      %cst_8 = arith.constant 0xFF800000 : f32
      %15 = vector.broadcast %cst_8 : f32 to vector<8x128xf32>
      %16 = arith.select %14, %11, %15 : vector<8x128xf32>
      %17 = arith.maximumf %3, %16 : vector<8x128xf32>
      %c2_i32_9 = arith.constant 2 : i32
      %18 = arith.muli %2, %c2_i32_9 : i32
      %c1_i32_10 = arith.constant 1 : i32
      %19 = arith.addi %18, %c1_i32_10 : i32
      %c1_i32_11 = arith.constant 1 : i32
      %20 = arith.subi %19, %c1_i32_11 : i32
      %c0_i32_12 = arith.constant 0 : i32
      %c15_i32_13 = arith.constant 15 : i32
      %21 = arith.maxsi %c0_i32_12, %20 : i32
      %22 = arith.minsi %c15_i32_13, %21 : i32
      %c0_14 = arith.constant 0 : index
      %23 = arith.index_cast %22 : i32 to index
      %c0_15 = arith.constant 0 : index
      %c0_16 = arith.constant 0 : index
      %24 = vector.load %arg2[%c0_14, %23, %c0_15, %c0_16] : memref<1x16x8x128xf32, #tpu.memory_space<vmem>>, vector<1x1x8x128xf32>
      %25 = vector.shape_cast %24 : vector<1x1x8x128xf32> to vector<8x128xf32>
      %c0_i32_17 = arith.constant 0 : i32
      %26 = arith.cmpi sge, %20, %c0_i32_17 : i32
      %c16_i32_18 = arith.constant 16 : i32
      %27 = arith.cmpi slt, %20, %c16_i32_18 : i32
      %28 = arith.andi %26, %27 : i1
      %cst_19 = arith.constant 0xFF800000 : f32
      %29 = vector.broadcast %cst_19 : f32 to vector<8x128xf32>
      %30 = arith.select %28, %25, %29 : vector<8x128xf32>
      %31 = arith.maximumf %17, %30 : vector<8x128xf32>
      %c2_i32_20 = arith.constant 2 : i32
      %32 = arith.muli %2, %c2_i32_20 : i32
      %c2_i32_21 = arith.constant 2 : i32
      %33 = arith.addi %32, %c2_i32_21 : i32
      %c1_i32_22 = arith.constant 1 : i32
      %34 = arith.subi %33, %c1_i32_22 : i32
      %c0_i32_23 = arith.constant 0 : i32
      %c15_i32_24 = arith.constant 15 : i32
      %35 = arith.maxsi %c0_i32_23, %34 : i32
      %36 = arith.minsi %c15_i32_24, %35 : i32
      %c0_25 = arith.constant 0 : index
      %37 = arith.index_cast %36 : i32 to index
      %c0_26 = arith.constant 0 : index
      %c0_27 = arith.constant 0 : index
      %38 = vector.load %arg2[%c0_25, %37, %c0_26, %c0_27] : memref<1x16x8x128xf32, #tpu.memory_space<vmem>>, vector<1x1x8x128xf32>
      %39 = vector.shape_cast %38 : vector<1x1x8x128xf32> to vector<8x128xf32>
      %c0_i32_28 = arith.constant 0 : i32
      %40 = arith.cmpi sge, %34, %c0_i32_28 : i32
      %c16_i32_29 = arith.constant 16 : i32
      %41 = arith.cmpi slt, %34, %c16_i32_29 : i32
      %42 = arith.andi %40, %41 : i1
      %cst_30 = arith.constant 0xFF800000 : f32
      %43 = vector.broadcast %cst_30 : f32 to vector<8x128xf32>
      %44 = arith.select %42, %39, %43 : vector<8x128xf32>
      %45 = arith.maximumf %31, %44 : vector<8x128xf32>
      %46 = vector.extract_strided_slice %45 {offsets = [0, 0], sizes = [8, 64], strides = [1, 1]} : vector<8x128xf32> to vector<8x64xf32>
      %47 = vector.extract_strided_slice %45 {offsets = [0, 64], sizes = [8, 64], strides = [1, 1]} : vector<8x128xf32> to vector<8x64xf32>
      %cst_31 = arith.constant 0xFF800000 : f32
      %48 = vector.broadcast %cst_31 : f32 to vector<8x64xf32>
      %cst_32 = arith.constant 0xFF800000 : f32
      %49 = vector.broadcast %cst_32 : f32 to vector<1x64xf32>
      %50 = vector.extract_strided_slice %47 {offsets = [0, 0], sizes = [7, 64], strides = [1, 1]} : vector<8x64xf32> to vector<7x64xf32>
      %51 = tpu.concatenate %49, %50 in 0 : vector<1x64xf32>, vector<7x64xf32> -> vector<8x64xf32>
      %52 = arith.maximumf %48, %51 : vector<8x64xf32>
      %53 = arith.maximumf %52, %46 : vector<8x64xf32>
      %54 = arith.maximumf %53, %47 : vector<8x64xf32>
      %c0_33 = arith.constant 0 : index
      %55 = arith.index_cast %arg4 : i32 to index
      %c0_34 = arith.constant 0 : index
      %c0_35 = arith.constant 0 : index
      %56 = vector.load %arg3[%c0_33, %55, %c0_34, %c0_35] : memref<1x8x8x64xf32, #tpu.memory_space<vmem>>, vector<1x1x8x64xf32>
      %57 = vector.shape_cast %56 : vector<1x1x8x64xf32> to vector<8x64xf32>
      %58 = vector.shape_cast %54 : vector<8x64xf32> to vector<1x1x8x64xf32>
      tpu.vector_store %arg3[%c0_33, %55, %c0_34, %c0_35], %58 {strides = array<i32>} : memref<1x8x8x64xf32, #tpu.memory_space<vmem>>, vector<1x1x8x64xf32>,
    }
    %c8_i32_0 = arith.constant 8 : i32
    return
  }
  func.func @transform_0(%arg0: i32, %arg1: i32) -> (i32, i32, i32, i32) {
    %c0_i32 = arith.constant 0 : i32
    %c0_i32_0 = arith.constant 0 : i32
    %c0_i32_1 = arith.constant 0 : i32
    %c0_i32_2 = arith.constant 0 : i32
    return %arg0, %c0_i32, %c0_i32_0, %c0_i32_1 : i32, i32, i32, i32
  }
  func.func @transform_1(%arg0: i32, %arg1: i32) -> (i32, i32, i32, i32) {
    %c0_i32 = arith.constant 0 : i32
    %c0_i32_0 = arith.constant 0 : i32
    %c0_i32_1 = arith.constant 0 : i32
    return %arg0, %arg1, %c0_i32, %c0_i32_0 : i32, i32, i32, i32
  }
}

</mosaic_0001>

<llo_original>
// kernel: tpu_custom_call.1
$region0: #{tpu_custom_call.1}
  #allocation0 [shape = 'u32[]', space=smem, size = 0x4, offset = 0x4, fixed_abs, tag = 'smem constant byte address 0x4 - core index']
  #allocation1 [shape = 'u32[144,128]{1,0:T(1,128)}', space=vmem, size = 0x12000, scoped, tag = 'internal scratch']
  %s0 = inlined_call_operand.hbm [shape: f32[2,16,8,128], index: 0, kind: input, shape index: {}]
  %s1 = inlined_call_operand.hbm [shape: f32[2,8,8,64], index: 1, kind: output, shape index: {}]
  %s2 = sld [smem:[#allocation0]]
  $region48: #{tpu_custom_call.1} parent=0
    _
  %s4 = ssub.s32 1, %s2
  %s5 = scalar_select 0, %s4, %s2
  $region1: #{tpu_custom_call.1} parent=0
    #allocation2 [shape = 'u8[131072]{0}', space=vmem, size = 0x20000, scoped, tag = 'input window, operand 0']
    #allocation3 [shape = 's32[2]{0}', space=sflag, size = 0x8, scoped, tag = 'scoped memory for tpu_custom_call.1']
    #allocation4 [shape = 's32[2]{0}', space=sflag, size = 0x8, scoped, tag = 'scoped memory for tpu_custom_call.1']
    #allocation5 [shape = 'u8[65536]{0}', space=vmem, size = 0x10000, scoped, tag = 'output window, operand 0']
    %6 = vsyncpa [#allocation3], 0
    %s7 = scalar_lea.sflag [#allocation3], 1
    %8 = vsyncpa %s7, 0
    %9 = vsyncpa [#allocation4], 0
    %s10 = scalar_lea.sflag [#allocation4], 1
    %11 = vsyncpa %s10, 0
    loop: start=0, step=1, limit=4
    $region2: #{tpu_custom_call.1} parent=1 // loop_pre_header
      _
    $region3: #{tpu_custom_call.1} parent=1 // loop_header
      %s13 = sphi 0, %s17
      %p14 = scmp.ge.s32.totalorder %s13, 4
      %s20 = sphi 0, %s32
      %s21 = sphi 0, %s28
      %s22 = sphi 0, %s20
      %s23 = sphi 0, %s21
      %s24 = sphi 0, %s22
      %s25 = sphi 0, %s23
      %s35 = sphi 0, %s37
      %s38 = sphi 0, %s35
      %s39 = sphi 0, %s38
      %s55 = sphi 0, %s39
      %s63 = sphi 0, %s65
      %s66 = sphi 0, %s63
      %s67 = sphi 0, %s66
      %s83 = sphi 0, %s67
    $region4: #{tpu_custom_call.1} parent=1 // loop_header_branch
      %16 = sbr.rel (%p14) target = $region8
    $region5: #{tpu_custom_call.1} parent=1 // loop_body
      %s18 = ssub.s32 %s13, 1
      %s19 = ssub.s32 %s13, 2
      %s26 = sadd.s32 1, %s21
      %p27 = scmp.ge.s32.totalorder %s26, 1
      %s28 = scalar_select %p27, 0, %s26
      %s29 = sadd.s32 1, %s20
      %s30 = scalar_select %p27, %s29, %s20
      %p31 = scmp.ge.s32.totalorder %s30, 2
      %s32 = scalar_select %p31, 0, %s30
      %s33 = ssub.s32 %s20, %s32
      %p34 = scmp.eq.s32.totalorder %s33, 0
      %s36 = sadd.s32 %s35, 1
      %s37 = scalar_select %p34, %s35, %s36
      %p40 = pneg %p34
      %p41 = scmp.eq.s32.totalorder %s13, 1
      %p42 = por %p40, %p41
      %p43 = scmp.ne.s32.totalorder %s35, %s38
      %p44 = scmp.eq.s32.totalorder %s13, 0
      %p45 = por %p43, %p44
      %p46 = scmp.ne.s32.totalorder %s35, %s38
      %p47 = scmp.eq.s32.totalorder %s18, 1
      %p48 = por %p46, %p47
      %p49 = scmp.ne.s32.totalorder %s38, %s39
      %p50 = scmp.eq.s32.totalorder %s18, 0
      %p51 = por %p49, %p50
      %p52 = scmp.ne.s32.totalorder %s38, %s39
      %p53 = scmp.eq.s32.totalorder %s19, 1
      %p54 = por %p52, %p53
      %p56 = scmp.ne.s32.totalorder %s39, %s55
      %p57 = scmp.eq.s32.totalorder %s19, 0
      %p58 = por %p56, %p57
      %s59 = ssub.s32 %s20, %s32
      %s60 = ssub.s32 %s21, %s28
      %s61 = sor.u32 %s59, %s60
      %p62 = scmp.eq.s32.totalorder %s61, 0
      %s64 = sadd.s32 %s63, 1
      %s65 = scalar_select %p62, %s63, %s64
      %p68 = pneg %p62
      %p69 = scmp.eq.s32.totalorder %s13, 1
      %p70 = por %p68, %p69
      %p71 = scmp.ne.s32.totalorder %s63, %s66
      %p72 = scmp.eq.s32.totalorder %s13, 0
      %p73 = por %p71, %p72
      %p74 = scmp.ne.s32.totalorder %s63, %s66
      %p75 = scmp.eq.s32.totalorder %s18, 1
      %p76 = por %p74, %p75
      %p77 = scmp.ne.s32.totalorder %s66, %s67
      %p78 = scmp.eq.s32.totalorder %s18, 0
      %p79 = por %p77, %p78
      %p80 = scmp.ne.s32.totalorder %s66, %s67
      %p81 = scmp.eq.s32.totalorder %s19, 1
      %p82 = por %p80, %p81
      %p84 = scmp.ne.s32.totalorder %s67, %s83
      %p85 = scmp.eq.s32.totalorder %s19, 0
      %p86 = por %p84, %p85
      %p87 = scmp.le.s32.totalorder 1, %s13
      %p88 = scmp.lt.s32.totalorder %s13, 3
      %p89 = pnand %p87, %p88
      %p90 = pneg %p89
      // Predicated region
      $region9: #{tpu_custom_call.1} parent=5 // pred_check
        _
      $region10: #{tpu_custom_call.1} parent=5 // pred_check_branch
        %92 = sbr.rel (%p89) target = $region12
      $region11: #{tpu_custom_call.1} parent=5 // pred_region
        %s93 = ssub.s32 %s13, 1
      $region12: #{tpu_custom_call.1} parent=5 // pred_fallthru
        _
      %p94 = scmp.lt.s32.totalorder %s13, 2
      // Predicated region
      $region13: #{tpu_custom_call.1} parent=5 // pred_check
        %p95 = pneg %p94
      $region14: #{tpu_custom_call.1} parent=5 // pred_check_branch
        %97 = sbr.rel (%p95) target = $region16
      $region15: #{tpu_custom_call.1} parent=5 // pred_region
        // Predicated region
        $region17: #{tpu_custom_call.1} parent=15 // pred_check
          %p98 = pneg %p45
        $region18: #{tpu_custom_call.1} parent=15 // pred_check_branch
          %100 = sbr.rel (%p98) target = $region20
        $region19: #{tpu_custom_call.1} parent=15 // pred_region
          %s101 = sand.u32 %s35, 1
          %s102 = scalar_lea.sflag [#allocation3], %s101
          %s103 = sand.u32 %s35, 1
          %s104 = smul.addr %s103, 128
          %s105 = scalar_lea.vmem [#allocation2], %s104
          %s107 = ssub.s32 2048, 2048
          %108 = vsyncadd %s102, %s107
          %s109 = smul.addr %s20, 16
          %s110 = smul.addr %s109, 128
          %s111 = scalar_lea.hbm %s0, %s110
          %s112 = sshll.u32 %s105, 4
          %s113 = int_to_ptr.vmem [resolvable:$true] %s112
          %118 = dma.hbm_to_vmem [thread:$0]  %s111, 2048, %s113, %s102, 128, 128, 8
        $region20: #{tpu_custom_call.1} parent=15 // pred_fallthru
          _
      $region16: #{tpu_custom_call.1} parent=5 // pred_fallthru
        _
      %p119 = scmp.le.s32.totalorder 1, %s13
      %p120 = scmp.lt.s32.totalorder %s13, 3
      %p121 = pnand %p119, %p120
      %p122 = pneg %p121
      // Predicated region
      $region21: #{tpu_custom_call.1} parent=5 // pred_check
        _
      $region22: #{tpu_custom_call.1} parent=5 // pred_check_branch
        %124 = sbr.rel (%p121) target = $region24
      $region23: #{tpu_custom_call.1} parent=5 // pred_region
        %s125 = ssub.s32 %s13, 1
        %s126 = sand.u32 %s38, 1
        %s127 = scalar_lea.sflag [#allocation3], %s126
        %s128 = sand.u32 %s38, 1
        %s129 = smul.addr %s128, 128
        %s130 = scalar_lea.vmem [#allocation2], %s129
        // Predicated region
        $region25: #{tpu_custom_call.1} parent=23 // pred_check
          %p131 = pneg %p51
        $region26: #{tpu_custom_call.1} parent=23 // pred_check_branch
          %133 = sbr.rel (%p131) target = $region28
        $region27: #{tpu_custom_call.1} parent=23 // pred_region
          %134 = dma.done %s127, 2048
        $region28: #{tpu_custom_call.1} parent=23 // pred_fallthru
          _
        %s135 = sand.u32 %s38, 1
        %s136 = scalar_lea.sflag [#allocation3], %s135
        %s137 = sand.u32 %s38, 1
        %s138 = smul.addr %s137, 128
        %s139 = scalar_lea.vmem [#allocation2], %s138
        %p140 = pneg %p51
        %p141 = pneg %p48
        %p142 = pneg %p79
        %p143 = pneg %p76
        %s144 = sand.u32 %s66, 1
        %s145 = scalar_lea.sflag [#allocation4], %s144
        %s146 = sand.u32 %s66, 1
        %s147 = smul.addr %s146, 64
        %s148 = scalar_lea.vmem [#allocation5], %s147
        %s149 = smul.u32 8, %s23
        loop: start=0, step=1, limit=8
        $region29: #{tpu_custom_call.1} parent=23 // loop_pre_header
          _
        $region30: #{tpu_custom_call.1} parent=23 // loop_header
          %s151 = sphi 0, %s155
          %p152 = scmp.ge.s32.totalorder %s151, 8
        $region31: #{tpu_custom_call.1} parent=23 // loop_header_branch
          %154 = sbr.rel (%p152) target = $region35
        $region32: #{tpu_custom_call.1} parent=23 // loop_body
          %s156 = smul.u32 %s23, 8
          %s157 = sadd.s32 %s156, %s151
          %s158 = smul.u32 %s157, 2
          %s159 = sadd.s32 %s158, 4294967295
          %p160 = scmp.gt.s32.totalorder %s159, 0
          %s161 = scalar_select %p160, %s159, 0
          %p162 = scmp.lt.s32.totalorder %s161, 15
          %s163 = scalar_select %p162, %s161, 15
          %s164 = smul.u32 %s163, 8
          %s165 = scalar_lea.vmem %s130, %s164 [#allocation2]
          %v166 = vld [vmem:[%s165] sm:$0xff]
          %p167 = scmp.ge.s32.totalorder %s159, 0
          %p168 = scmp.lt.s32.totalorder %s159, 16
          %p169 = pnand %p167, %p168
          %p170 = pneg %p169
          %s171 = scalar_select %p170, 1, 0
          %v172 = vstv %s171
          %vm173 = vcmp.eq.s32.totalorder %v172, 1
          %v174 = vsel %vm173, %v166, -inf
          %p175 = scmp.gt.s32.totalorder %s158, 0
          %s176 = scalar_select %p175, %s158, 0
          %p177 = scmp.lt.s32.totalorder %s176, 15
          %s178 = scalar_select %p177, %s176, 15
          %s179 = smul.u32 %s178, 8
          %s180 = scalar_lea.vmem %s130, %s179 [#allocation2]
          %v181 = vld [vmem:[%s180] sm:$0xff]
          %p182 = scmp.ge.s32.totalorder %s158, 0
          %p183 = scmp.lt.s32.totalorder %s158, 16
          %p184 = pnand %p182, %p183
          %p185 = pneg %p184
          %s186 = scalar_select %p185, 1, 0
          %v187 = vstv %s186
          %vm188 = vcmp.eq.s32.totalorder %v187, 1
          %v189 = vsel %vm188, %v181, -inf
          %v190 = vmax.f32 %v174, %v189
          %s191 = sadd.s32 %s158, 1
          %p192 = scmp.gt.s32.totalorder %s191, 0
          %s193 = scalar_select %p192, %s191, 0
          %p194 = scmp.lt.s32.totalorder %s193, 15
          %s195 = scalar_select %p194, %s193, 15
          %s196 = smul.u32 %s195, 8
          %s197 = scalar_lea.vmem %s130, %s196 [#allocation2]
          %v198 = vld [vmem:[%s197] sm:$0xff]
          %p199 = scmp.ge.s32.totalorder %s191, 0
          %p200 = scmp.lt.s32.totalorder %s191, 16
          %p201 = pnand %p199, %p200
          %p202 = pneg %p201
          %s203 = scalar_select %p202, 1, 0
          %v204 = vstv %s203
          %vm205 = vcmp.eq.s32.totalorder %v204, 1
          %v206 = vsel %vm205, %v198, -inf
          %v207 = vmax.f32 %v190, %v206
          %v209 = vrot.slane %v207, 7
          %210 = vrot.lane.b32.xlu0 %v209, 64
          %v211 = vpop.permute.xlu0 %210
          %vm213 = vcmask 1040384
          %v214 = vsel %vm213, -inf, %v211
          %v215 = vmax.f32 %v214, %v207
          %216 = vrot.lane.b32.xlu0 %v207, 64
          %v217 = vpop.permute.xlu0 %216
          %v219 = vmax.f32 %v215, %v217
          %s220 = smul.u32 %s151, 8
          %s221 = scalar_lea.vmem %s148, %s220 [#allocation5]
          %vm222 = vcmask 523264
          %223 = vst.msk [vmem:[%s221] sm:$0xff] %vm222, %v219
        $region33: #{tpu_custom_call.1} parent=23 // loop_footer
          %s155 = sadd.s32 1, %s151
        $region34: #{tpu_custom_call.1} parent=23 // loop_footer_branch
          %150 = sbr.rel target = $region30
        $region35: #{tpu_custom_call.1} parent=23 // loop_exit
          _
        %s224 = sand.u32 %s66, 1
        %s225 = scalar_lea.sflag [#allocation4], %s224
        %s226 = sand.u32 %s66, 1
        %s227 = smul.addr %s226, 64
        %s228 = scalar_lea.vmem [#allocation5], %s227
        // Predicated region
        $region36: #{tpu_custom_call.1} parent=23 // pred_check
          %p229 = pneg %p76
        $region37: #{tpu_custom_call.1} parent=23 // pred_check_branch
          %231 = sbr.rel (%p229) target = $region39
        $region38: #{tpu_custom_call.1} parent=23 // pred_region
          %s232 = smul.u32 8, %s23
          %s234 = ssub.s32 1024, 1024
          %235 = vsyncadd %s225, %s234
          %s236 = smul.addr %s22, 8
          %s237 = sadd.s32 %s232, %s236
          %s238 = smul.addr %s237, 128
          %s239 = scalar_lea.hbm %s1, %s238
          %s240 = sshll.u32 %s228, 4
          %s241 = int_to_ptr.vmem [resolvable:$true] %s240
          %246 = dma.vmem_to_hbm [thread:$0]  %s241, 1024, %s239, %s225, 128, 128, 8
        $region39: #{tpu_custom_call.1} parent=23 // pred_fallthru
          _
      $region24: #{tpu_custom_call.1} parent=5 // pred_fallthru
        _
      %p247 = scmp.le.s32.totalorder 2, %s13
      // Predicated region
      $region40: #{tpu_custom_call.1} parent=5 // pred_check
        %p248 = pneg %p247
      $region41: #{tpu_custom_call.1} parent=5 // pred_check_branch
        %250 = sbr.rel (%p248) target = $region43
      $region42: #{tpu_custom_call.1} parent=5 // pred_region
        %s251 = ssub.s32 %s13, 2
        // Predicated region
        $region44: #{tpu_custom_call.1} parent=42 // pred_check
          %p252 = pneg %p82
        $region45: #{tpu_custom_call.1} parent=42 // pred_check_branch
          %254 = sbr.rel (%p252) target = $region47
        $region46: #{tpu_custom_call.1} parent=42 // pred_region
          %s255 = sand.u32 %s67, 1
          %s256 = scalar_lea.sflag [#allocation4], %s255
          %s257 = sand.u32 %s67, 1
          %s258 = smul.addr %s257, 64
          %s259 = scalar_lea.vmem [#allocation5], %s258
          %260 = dma.done %s256, 1024
        $region47: #{tpu_custom_call.1} parent=42 // pred_fallthru
          _
      $region43: #{tpu_custom_call.1} parent=5 // pred_fallthru
        _
    $region6: #{tpu_custom_call.1} parent=1 // loop_footer
      %s17 = sadd.s32 1, %s13
    $region7: #{tpu_custom_call.1} parent=1 // loop_footer_branch
      %12 = sbr.rel target = $region3
    $region8: #{tpu_custom_call.1} parent=1 // loop_exit
      _
    %261 = vsyncpa [#allocation3], 1
    %s262 = scalar_lea.sflag [#allocation3], 1
    %263 = vsyncpa %s262, 1
    %264 = vsyncpa [#allocation4], 1
    %s265 = scalar_lea.sflag [#allocation4], 1
    %266 = vsyncpa %s265, 1

</llo_original>
